<compile_context>
chip_gen: v7x
topology: tpu7x:2x2x1
jax: 0.10.0
libtpu: 0.0.40
codegen_flags: <defaults>
</compile_context>

<pallas_src>
import jax
import jax.numpy as jnp
from jax.experimental import pallas as pl
from jax.experimental.pallas import tpu as pltpu


def _round_up(n, m):
    return ((n + m - 1) // m) * m


def _cdiv(a, b):
    return (a + b - 1) // b


# ---------------------------------------------------------------------------
# Kernels
# ---------------------------------------------------------------------------

def _logreg_kernel_resident(x_ref, w_ref, o_ref):
    # Single K block: x_ref (tm, K), w_ref (K, tn). With nc == 1 the weight block index is
    # constant across the grid, so Pallas keeps it resident in VMEM and only x streams from HBM.
    logits = jnp.dot(x_ref[...], w_ref[...], preferred_element_type=jnp.float32)
    # sigmoid's exp runs on the EUP slot -> essentially free next to the MXU.
    o_ref[...] = jax.nn.sigmoid(logits).astype(o_ref.dtype)


def _logreg_kernel_ktiled(x_ref, w_ref, o_ref, acc_ref):
    # K-tiled reduction: grid = (batch tiles, class tiles, K tiles), K innermost ("arbitrary").
    k = pl.program_id(2)
    partial = jnp.dot(x_ref[...], w_ref[...], preferred_element_type=jnp.float32)

    @pl.when(k == 0)
    def _():
        acc_ref[...] = partial          # direct assign: no zero-fill + add pass

    @pl.when(k > 0)
    def _():
        acc_ref[...] += partial

    @pl.when(k == pl.num_programs(2) - 1)
    def _():
        o_ref[...] = jax.nn.sigmoid(acc_ref[...]).astype(o_ref.dtype)


# ---------------------------------------------------------------------------
# Wrapper
# ---------------------------------------------------------------------------

_VMEM_TILE_BUDGET = 44 << 20   # conservative: leaves headroom on v7x's 64 MiB physical VMEM


def _choose_tiles(B, F, C_pad, *, block_m, block_k, block_n, in_itemsize, budget):
    # Batch tile: full batch if small (full-dim block is always legal), else block_m rows (mult of 8).
    tm = B if B <= block_m else block_m

    # Class tile: full class dim when it fits one block; otherwise the largest multiple of 128
    # dividing C_pad that is <= block_n (128 always divides C_pad on this branch).
    if C_pad <= block_n:
        tn = C_pad
    else:
        tn = block_n
        while C_pad % tn != 0:
            tn -= 128

    def fits(tm_, tk_, tn_, with_acc):
        est = (2 * tm_ * tk_ + 2 * tk_ * tn_) * in_itemsize + 2 * tm_ * tn_ * 4
        if with_acc:
            est += tm_ * tn_ * 4
        return est <= budget

    # Preferred: one K block covering the whole feature axis -> weight block index constant across
    # batch tiles -> resident in VMEM, no per-batch-tile weight re-DMA.
    tm_try = tm
    while not fits(tm_try, F, tn, False) and tm_try > 128:
        tm_try = max(128, _round_up(tm_try // 2, 8))
    if fits(tm_try, F, tn, False):
        return tm_try, F, tn, False

    # Fallback: tile the feature (reduction) axis; F gets zero-padded to a multiple of tk.
    tk = block_k
    tm_try = tm
    while not fits(tm_try, tk, tn, True):
        if tm_try > 128:
            tm_try = max(128, _round_up(tm_try // 2, 8))
        elif tk > 128:
            tk //= 2
        else:
            break
    return tm_try, tk, tn, True


def logistic_regression(x, weight, *, block_m=1024, block_k=512, block_n=1024,
                        use_bf16=False, vmem_tile_budget=_VMEM_TILE_BUDGET):
    """sigmoid(x @ weight.T). x: (B, F); weight: (C, F) (PyTorch nn.Linear layout, bias=False)."""
    B, F = x.shape
    C, F2 = weight.shape
    assert F == F2, "feature dims of x and weight must match"

    # Class dim: pad to a multiple of 128 only when C >= 128 (lane-dense stores + clean class
    # tiling). For small C, padded writeback + wrapper slice costs more HBM traffic than masked
    # stores, so keep the true C as a full-dim block.
    C_pad = _round_up(C, 128) if C >= 128 else C
    w = weight if C_pad == C else jnp.pad(weight, ((0, C_pad - C), (0, 0)))
    # One-time wrapper transpose of the (small) weight -> canonical (M,K)x(K,N) MXU contraction
    # in the kernel, avoiding any per-grid-step XLU transpose of the weight tile.
    w = w.T  # (F, C_pad)

    in_itemsize = 2 if use_bf16 else 4
    tm, tk, tn, k_tiled = _choose_tiles(
        B, F, C_pad, block_m=block_m, block_k=block_k, block_n=block_n,
        in_itemsize=in_itemsize, budget=vmem_tile_budget)

    x_in, w_in = x, w
    if k_tiled:
        F_pad = _round_up(F, tk)
        if F_pad != F:
            # Zero padding contributes nothing to the contraction -> exact.
            x_in = jnp.pad(x_in, ((0, 0), (0, F_pad - F)))
            w_in = jnp.pad(w_in, ((0, F_pad - F), (0, 0)))
        nk = F_pad // tk
    else:
        nk = 1

    if use_bf16:
        # Halves the HBM traffic for the streamed x and feeds the MXU its native input dtype.
        x_in = x_in.astype(jnp.bfloat16)
        w_in = w_in.astype(jnp.bfloat16)

    nm = _cdiv(B, tm)
    nc = C_pad // tn

    # Per-step working set -> explicit scoped-VMEM limit (defaults are 16/32 MiB, well below
    # physical). Capped at 56 MiB to keep headroom on v7x (64 MiB physical).
    est = (2 * tm * tk + 2 * tk * tn) * in_itemsize + 2 * tm * tn * 4
    if k_tiled:
        est += tm * tn * 4
    vmem_limit = int(min(max(2 * est, 32 << 20), 56 << 20))

    out_shape = jax.ShapeDtypeStruct((B, C_pad), jnp.float32)

    if not k_tiled:
        # Pick the grid order that minimizes redundant HBM re-streaming: batch-outer re-streams
        # the weight (nm-1) extra times; class-outer re-streams x (nc-1) extra times.
        # (With nc == 1 the weight block index is constant -> fully resident.)
        batch_outer = (nc == 1) or ((nm - 1) * C_pad * F <= (nc - 1) * B * F)
        if batch_outer:
            grid = (nm, nc)
            x_map = lambda i, j: (i, 0)
            w_map = lambda i, j: (0, j)
            o_map = lambda i, j: (i, j)
        else:
            grid = (nc, nm)
            x_map = lambda j, i: (i, 0)
            w_map = lambda j, i: (0, j)
            o_map = lambda j, i: (i, j)
        out_padded = pl.pallas_call(
            _logreg_kernel_resident,
            out_shape=out_shape,
            grid=grid,
            in_specs=[
                pl.BlockSpec((tm, F), x_map),
                pl.BlockSpec((F, tn), w_map),
            ],
            out_specs=pl.BlockSpec((tm, tn), o_map),
            compiler_params=pltpu.CompilerParams(
                dimension_semantics=("parallel", "parallel"),
                vmem_limit_bytes=vmem_limit,
            ),
        )(x_in, w_in)
    else:
        out_padded = pl.pallas_call(
            _logreg_kernel_ktiled,
            out_shape=out_shape,
            grid=(nm, nc, nk),
            in_specs=[
                pl.BlockSpec((tm, tk), lambda i, j, k: (i, k)),
                pl.BlockSpec((tk, tn), lambda i, j, k: (k, j)),
            ],
            out_specs=pl.BlockSpec((tm, tn), lambda i, j, k: (i, j)),
            scratch_shapes=[pltpu.VMEM((tm, tn), jnp.float32)],
            compiler_params=pltpu.CompilerParams(
                dimension_semantics=("parallel", "parallel", "arbitrary"),
                vmem_limit_bytes=vmem_limit,
            ),
        )(x_in, w_in)

    return out_padded[:, :C] if C_pad != C else out_padded


def xavier_uniform(key, shape):
    # nn.init.xavier_uniform_ for a (out_features, in_features) weight.
    fan_out, fan_in = shape
    bound = (6.0 / (fan_in + fan_out)) ** 0.5
    return jax.random.uniform(key, shape, minval=-bound, maxval=bound, dtype=jnp.float32)


if __name__ == "__main__":
    key = jax.random.PRNGKey(0)
    k_x, k_w, k_x2, k_w2 = jax.random.split(key, 4)

    # Primary: small shapes consistent with the module.
    batch, n_features, num_classes = 8, 32, 16
    x = jax.random.normal(k_x, (batch, n_features), dtype=jnp.float32)
    weight = xavier_uniform(k_w, (num_classes, n_features))  # PyTorch (C, F) layout

    out = jax.block_until_ready(logistic_regression(x, weight))
    ref = jax.nn.sigmoid(x @ weight.T)
    assert out.shape == (batch, num_classes)
    assert jnp.allclose(out, ref, atol=1e-5, rtol=1e-5)

    # Secondary: ragged shapes exercising class padding + slice, still small/fast.
    b2, f2, c2 = 300, 200, 130
    x2 = jax.random.normal(k_x2, (b2, f2), dtype=jnp.float32)
    w2 = xavier_uniform(k_w2, (c2, f2))
    out2 = jax.block_until_ready(logistic_regression(x2, w2))
    ref2 = jax.nn.sigmoid(x2 @ w2.T)
    assert out2.shape == (b2, c2)
    assert jnp.allclose(out2, ref2, atol=1e-5, rtol=1e-5)

    # Tertiary: force the K-tiled accumulator path by shrinking the tile budget.
    out3 = jax.block_until_ready(logistic_regression(x2, w2, vmem_tile_budget=1 << 10))
    assert jnp.allclose(out3, ref2, atol=1e-5, rtol=1e-5)

    print("KERNEL_OK")
</pallas_src>

<mosaic_0001>
module attributes {stable_mosaic.version = 11 : i64} {
  func.func @_logreg_kernel_resident(%arg0: i32, %arg1: i32, %arg2: memref<8x32xf32, #tpu.memory_space<vmem>>, %arg3: memref<32x16xf32, #tpu.memory_space<vmem>>, %arg4: memref<8x16xf32, #tpu.memory_space<vmem>>) attributes {dimension_semantics = [#tpu.dimension_semantics<parallel>, #tpu.dimension_semantics<parallel>], iteration_bounds = array<i64: 1, 1>, scalar_prefetch = 0 : i64, scratch_operands = 0 : i64, tpu.core_type = #tpu.core_type<tc>, window_params = [{transform_indices = @transform_0, window_bounds = array<i64: 8, 32>}, {transform_indices = @transform_1, window_bounds = array<i64: 32, 16>}, {transform_indices = @transform_2, window_bounds = array<i64: 8, 16>}]} {
    %c0 = arith.constant 0 : index
    %c0_0 = arith.constant 0 : index
    %0 = vector.load %arg2[%c0, %c0_0] : memref<8x32xf32, #tpu.memory_space<vmem>>, vector<8x32xf32>
    %c0_1 = arith.constant 0 : index
    %c0_2 = arith.constant 0 : index
    %1 = vector.load %arg3[%c0_1, %c0_2] : memref<32x16xf32, #tpu.memory_space<vmem>>, vector<32x16xf32>
    %cst = arith.constant dense<0.000000e+00> : vector<8x16xf32>
    %2 = tpu.matmul %0, %1, %cst {dimension_numbers = #tpu.dot_dimension_numbers<[1], [0], [0], [1], [0, 0, 1, 1], [], []>} : vector<8x32xf32>, vector<32x16xf32>, vector<8x16xf32> -> vector<8x16xf32>
    %3 = arith.negf %2 : vector<8x16xf32>
    %4 = math.exp %3 : vector<8x16xf32>
    %cst_3 = arith.constant 1.000000e+00 : f32
    %5 = vector.broadcast %cst_3 : f32 to vector<8x16xf32>
    %6 = arith.addf %5, %4 : vector<8x16xf32>
    %7 = arith.divf %5, %6 : vector<8x16xf32>
    %c0_4 = arith.constant 0 : index
    %c0_5 = arith.constant 0 : index
    %8 = vector.load %arg4[%c0_4, %c0_5] : memref<8x16xf32, #tpu.memory_space<vmem>>, vector<8x16xf32>
    tpu.vector_store %arg4[%c0_4, %c0_5], %7 {strides = array<i32>} : memref<8x16xf32, #tpu.memory_space<vmem>>, vector<8x16xf32>,
    return
  }
  func.func @transform_0(%arg0: i32, %arg1: i32) -> (i32, i32) {
    %c0_i32 = arith.constant 0 : i32
    %c0_i32_0 = arith.constant 0 : i32
    return %arg0, %c0_i32 : i32, i32
  }
  func.func @transform_1(%arg0: i32, %arg1: i32) -> (i32, i32) {
    %c0_i32 = arith.constant 0 : i32
    %c0_i32_0 = arith.constant 0 : i32
    return %c0_i32, %arg1 : i32, i32
  }
  func.func @transform_2(%arg0: i32, %arg1: i32) -> (i32, i32) {
    %c0_i32 = arith.constant 0 : i32
    return %arg0, %arg1 : i32, i32
  }
}

</mosaic_0001>

<llo_original>
// kernel: tpu_custom_call.1
$region0: #{tpu_custom_call.1}
  #allocation0 [shape = 'u32[]', space=smem, size = 0x4, offset = 0x4, fixed_abs, tag = 'smem constant byte address 0x4 - core index']
  #allocation1 [shape = 'u32[144,128]{1,0:T(1,128)}', space=vmem, size = 0x12000, scoped, tag = 'internal scratch']
  %s0 = inlined_call_operand.vmem [shape: f32[8,32], index: 0, kind: input, shape index: {}]
  %s1 = inlined_call_operand.vmem [shape: f32[32,16], index: 1, kind: input, shape index: {}]
  %s2 = inlined_call_operand.hbm [shape: f32[8,16], index: 2, kind: output, shape index: {}]
  %s3 = sld [smem:[#allocation0]]
  $region18: #{tpu_custom_call.1} parent=0
    _
  %s5 = ssub.s32 1, %s3
  %s6 = scalar_select 0, %s5, %s3
  $region1: #{tpu_custom_call.1} parent=0
    #allocation2 [shape = 'u8[4096]{0}', space=vmem, size = 0x1000, scoped, tag = 'output window, operand 0, single buffered']
    #allocation3 [shape = 's32[1]{0}', space=sflag, size = 0x4, scoped, tag = 'scoped memory for tpu_custom_call.1']
    %7 = vsyncpa [#allocation3], 0
    // Predicated region
    $region2: #{tpu_custom_call.1} parent=1 // pred_check
      _
    $region3: #{tpu_custom_call.1} parent=1 // pred_check_branch
      %9 = sbr.rel (0) target = $region5
    $region4: #{tpu_custom_call.1} parent=1 // pred_region
      _
    $region5: #{tpu_custom_call.1} parent=1 // pred_fallthru
      _
    // Predicated region
    $region6: #{tpu_custom_call.1} parent=1 // pred_check
      _
    $region7: #{tpu_custom_call.1} parent=1 // pred_check_branch
      %11 = sbr.rel (0) target = $region9
    $region8: #{tpu_custom_call.1} parent=1 // pred_region
      _
    $region9: #{tpu_custom_call.1} parent=1 // pred_fallthru
      _
    %v12 = vld [vmem:[%s0] sm:$0xff]
    %v13 = vld [vmem:[%s1] sm:$0xff]
    %v14 = vld [vmem:[%s1 + $0x8] sm:$0xff]
    %v15 = vld [vmem:[%s1 + $0x10] sm:$0xff]
    %v16 = vld [vmem:[%s1 + $0x18] sm:$0xff]
    %vm17 = vcmask 261120
    %v19 = vsel %vm17, %v12, 0
    %21 = vmatprep.subr.mxu0 0.0
    %22 = vmatpush1.msra.mxu0 %v13
    %23 = vmatprep.subr.mxu0 0.0
    %24 = vmatpush1.msra.mxu0 %v14
    %25 = vmatprep.subr.mxu0 0.0
    %26 = vmatpush1.msra.mxu0 %v15
    %27 = vmatprep.subr.mxu0 0.0
    %28 = vmatpush1.msra.mxu0 %v16
    %29 = vmatprep.subr.mxu0 0.0
    %30 = vmatpush1.msra.mxu0 0.0
    %31 = vmatprep.subr.mxu0 0.0
    %32 = vmatpush1.msra.mxu0 0.0
    %33 = vmatprep.subr.mxu0 0.0
    %34 = vmatpush1.msra.mxu0 0.0
    %35 = vmatprep.subr.mxu0 0.0
    %36 = vmatpush1.msra.mxu0 0.0
    %37 = vmatprep.subr.mxu0 0.0
    %38 = vmatpush1.msra.mxu0 0.0
    %39 = vmatprep.subr.mxu0 0.0
    %40 = vmatpush1.msra.mxu0 0.0
    %41 = vmatprep.subr.mxu0 0.0
    %42 = vmatpush1.msra.mxu0 0.0
    %43 = vmatprep.subr.mxu0 0.0
    %44 = vmatpush1.msra.mxu0 0.0
    %45 = vmatprep.subr.mxu0 0.0
    %46 = vmatpush1.msra.mxu0 0.0
    %47 = vmatprep.subr.mxu0 0.0
    %48 = vmatpush1.msra.mxu0 0.0
    %49 = vmatprep.subr.mxu0 0.0
    %50 = vmatpush1.msra.mxu0 0.0
    %51 = vmatprep.subr.mxu0 0.0
    %52 = vmatpush1.msra.mxu0 0.0
    %53 = vmatprep.subr.mxu0 0.0
    %54 = vmatpush1.msra.mxu0 0.0
    %55 = vmatprep.subr.mxu0 0.0
    %56 = vmatpush1.msra.mxu0 0.0
    %57 = vmatprep.subr.mxu0 0.0
    %58 = vmatpush1.msra.mxu0 0.0
    %59 = vmatprep.subr.mxu0 0.0
    %60 = vmatpush1.msra.mxu0 0.0
    %61 = vmatprep.subr.mxu0 0.0
    %62 = vmatpush1.msra.mxu0 0.0
    %63 = vmatprep.subr.mxu0 0.0
    %64 = vmatpush1.msra.mxu0 0.0
    %65 = vmatprep.subr.mxu0 0.0
    %66 = vmatpush1.msra.mxu0 0.0
    %67 = vmatprep.subr.mxu0 0.0
    %68 = vmatpush1.msra.mxu0 0.0
    %69 = vmatprep.subr.mxu0 0.0
    %70 = vmatpush1.msra.mxu0 0.0
    %71 = vmatprep.subr.mxu0 0.0
    %72 = vmatpush1.msra.mxu0 0.0
    %73 = vmatprep.subr.mxu0 0.0
    %74 = vmatpush1.msra.mxu0 0.0
    %75 = vmatprep.subr.mxu0 0.0
    %76 = vmatpush1.msra.mxu0 0.0
    %77 = vmatprep.subr.mxu0 0.0
    %78 = vmatpush1.msra.mxu0 0.0
    %79 = vmatprep.subr.mxu0 0.0
    %80 = vmatpush1.msra.mxu0 0.0
    %81 = vmatprep.subr.mxu0 0.0
    %82 = vmatpush1.msra.mxu0 0.0
    %83 = vmatprep.subr.mxu0 0.0
    %84 = vmatpush1.msra.mxu0 0.0
    %85 = vmatprep.mubr.f32.mxu0 0.0
    %86 = vmatmul.mubr.f32.gmra.mrb[0].mxu0 %v19
    %v87 = vpop.f32.mrb[0].mxu0
    %v88 = vadd.f32 0.0, %v87
    %v89 = vpop.f32.mrb[0].mxu0
    %90 = vdwg.mxu0
    %v91 = vxor.u32 %v88, 2147483648
    %v92 = vmul.f32 %v91, 1.442695
    %v93 = vpow.pop %v92
    %v94 = vadd.f32 %v93, 1.0
    %v95 = vrcp.pop %v94
    %v96 = vmul.f32 1.0, %v95
    %vm97 = vcmask 130048
    %98 = vst.msk [vmem:[#allocation2] sm:$0xff] %vm97, %v96
    // Predicated region
    $region10: #{tpu_custom_call.1} parent=1 // pred_check
      _
    $region11: #{tpu_custom_call.1} parent=1 // pred_check_branch
      %100 = sbr.rel (0) target = $region13
    $region12: #{tpu_custom_call.1} parent=1 // pred_region
      %s102 = ssub.s32 128, 128
      %103 = vsyncadd [#allocation3], %s102
      %s105 = sshll.u32 [#allocation2], 4
      %s106 = int_to_ptr.vmem [resolvable:$true] %s105
      %108 = dma.vmem_to_hbm [thread:$0]  %s106, 128, %s2, [#allocation3]
    $region13: #{tpu_custom_call.1} parent=1 // pred_fallthru
      _
    // Predicated region
    $region14: #{tpu_custom_call.1} parent=1 // pred_check
      _
    $region15: #{tpu_custom_call.1} parent=1 // pred_check_branch
      %110 = sbr.rel (0) target = $region17
    $region16: #{tpu_custom_call.1} parent=1 // pred_region
      %111 = dma.done [#allocation3], 128
    $region17: #{tpu_custom_call.1} parent=1 // pred_fallthru
      _
    %112 = vsyncpa [#allocation3], 1

</llo_original>
